<compile_context>
chip_gen: v7x
topology: tpu7x:2x2x1
jax: 0.10.0
libtpu: 0.0.40
codegen_flags: <defaults>
</compile_context>

<pallas_src>
import jax
import jax.numpy as jnp
import numpy as np
from jax.experimental import pallas as pl
from jax.experimental.pallas import tpu as pltpu


def _vmem_limit_bytes():
    """Generation-aware VMEM budget: ~3/4 of physical capacity, capped at 96 MiB
    (128 MiB parts -> 96 MiB, v7x's 64 MiB -> 48 MiB)."""
    try:
        cap = int(pltpu.get_tpu_info().vmem_capacity_bytes)
    except Exception:
        cap = 64 * 1024 * 1024
    return int(max(32 * 1024 * 1024, min(96 * 1024 * 1024, (cap * 3) // 4)))


def _pick_row_tile(h, per_row_bytes, budget_bytes):
    """Pick an input-row tile THI.  Returns (thi, h_pad).

    Prefers the largest divisor of h that fits the VMEM budget; if h only has
    degenerate divisors (prime/odd h) the caller pads H to h_pad = t*thi so the
    tile stays near the budget-optimal size instead of collapsing to 1 row."""
    target = int(max(1, min(h, budget_bytes // max(1, per_row_bytes))))
    best = 1
    for cand in range(target, 0, -1):
        if h % cand == 0:
            best = cand
            break
    if best == h or 2 * best >= target:
        return best, h
    t = -(-h // target)          # cdiv
    thi = -(-h // t)
    return thi, t * thi


# ----------------------------------------------------------------------------
# Kernel 1: nearest-neighbor 2x upsample (use_conv=False path).
# out[n, i, a, j, b*C + c] = x[n, i, j, c]   for a, b in {0, 1}
# -> lane-dense (W, 2C) stores; the (H,2)->(2H) and (W,2C)->(2W,C) merges are
#    free row-major relabels done by the wrapper reshape.
# ----------------------------------------------------------------------------
def _upsample2x_kernel(x_ref, o_ref):
    x = x_ref[0]                                    # (THI, W, C)
    xx = jnp.concatenate([x, x], axis=-1)           # (THI, W, 2C): column interleave via lanes
    o_ref[0] = jnp.broadcast_to(xx[:, None], o_ref.shape[1:])  # (THI, 2, W, 2C): row interleave


def upsample_nearest2x_nhwc(x):
    n, h, w, c = x.shape
    it = x.dtype.itemsize
    limit = _vmem_limit_bytes()
    # per input row: in block(x2 buffers) + interleave temps + out block(4x, x2 buffers)
    per_row = 16 * w * c * it
    thi, h_pad = _pick_row_tile(h, per_row, limit // 2 - (1 << 20))
    if h_pad != h:
        x = jnp.pad(x, ((0, 0), (0, h_pad - h), (0, 0), (0, 0)))
    t = h_pad // thi

    out5 = pl.pallas_call(
        _upsample2x_kernel,
        out_shape=jax.ShapeDtypeStruct((n, h_pad, 2, w, 2 * c), x.dtype),
        grid=(n, t),
        in_specs=[pl.BlockSpec((1, thi, w, c), lambda i, j: (i, j, 0, 0))],
        out_specs=pl.BlockSpec((1, thi, 2, w, 2 * c), lambda i, j: (i, j, 0, 0, 0)),
        compiler_params=pltpu.CompilerParams(
            dimension_semantics=("parallel", "parallel"),
            vmem_limit_bytes=limit),
        cost_estimate=pl.CostEstimate(
            flops=0, transcendentals=0,
            bytes_accessed=int(5 * n * h_pad * w * c * it)),
    )(x)
    out = out5.reshape(n, 2 * h_pad, 2 * w, c)       # pure relabel reshape
    return out[:, :2 * h] if h_pad != h else out


# ----------------------------------------------------------------------------
# Kernel 2: fused nearest-2x upsample + 3x3 "same" conv (use_conv=True path).
#
# Output pixel (2i+a, 2j+b): the 3x3 taps on the upsampled+padded image collapse
# onto a 2x2 window of the zero-padded *input*:
#   x_pad[i + a + rr, j + b + cc],  rr, cc in {0,1}
# with phase-folded weights
#   Wf[a,b,rr,cc] = sum_{dh in R[a][rr], dw in R[b][cc]} W[dh,dw],
#   R[0] = ({0}, {1,2}),  R[1] = ({0,1}, {2}).
# => 4 matmuls per tile, each K = 4*Cin, f32 accumulation.
# ----------------------------------------------------------------------------
def _upsample_conv3x3_kernel(x_ref, top_ref, bot_ref, wm_ref, b_ref, o_ref):
    # x_ref  : (1, THI, W, Cin)    this tile's input rows
    # top_ref: (1, 1,  W, Cin)     input row just above the tile (clamped at j==0)
    # bot_ref: (1, 1,  W, Cin)     input row just below the tile (clamped at last j)
    # wm_ref : (2, 2, 4*Cin, Cout) row/col-phase folded weights
    # b_ref  : (1, Cout)           bias (f32)
    # o_ref  : (1, THI, 2, W, 2*Cout)
    j = pl.program_id(1)
    t = pl.num_programs(1)
    xb = x_ref[0]
    thi, w, cin = xb.shape
    cout = b_ref.shape[-1]

    # Halo rows: zero them at the image boundary (index map clamped them there).
    top = top_ref[0, 0] * (j > 0).astype(xb.dtype)
    bot = bot_ref[0, 0] * (j < t - 1).astype(xb.dtype)

    # (THI+2, W+2, Cin) zero-padded slab assembled in VMEM (no HBM pad/stack pass).
    slab = jnp.concatenate([top[None], xb, bot[None]], axis=0)       # (THI+2, W, Cin)
    zcol = jnp.zeros((thi + 2, 1, cin), slab.dtype)
    slab = jnp.concatenate([zcol, slab, zcol], axis=1)               # (THI+2, W+2, Cin)

    bias = b_ref[0][None, None, :]
    for a in range(2):            # output row phase
        for cb in range(2):       # output column phase
            taps = [slab[a + rr:a + rr + thi, cb + cc:cb + cc + w, :]
                    for rr in range(2) for cc in range(2)]
            am = jnp.concatenate(taps, axis=-1).reshape(thi * w, 4 * cin)
            acc = jnp.dot(am, wm_ref[a, cb], preferred_element_type=jnp.float32)
            acc = acc.reshape(thi, w, cout) + bias
            # Direct store into this phase's channel slice (no lane concat copy).
            o_ref[0, :, a, :, cb * cout:(cb + 1) * cout] = acc.astype(o_ref.dtype)


def _fold_upsample_into_weights(w_hwio):
    """(3,3,Cin,Cout) SAME-conv weights -> (2 row-phase, 2 col-phase, 4*Cin, Cout)
    weights of the fused nearest-2x-upsample + conv (tap duplication pre-summed
    in f32 along both spatial directions, then cast back to the weight dtype)."""
    w32 = w_hwio.astype(jnp.float32)
    sets = (((0,), (1, 2)), ((0, 1), (2,)))        # taps contributing to phase 0 / 1
    phases = []
    for a in range(2):
        row = []
        for cb in range(2):
            taps = []
            for rr in range(2):
                for cc in range(2):
                    acc = 0.0
                    for dh in sets[a][rr]:
                        for dw in sets[cb][cc]:
                            acc = acc + w32[dh, dw]
                    taps.append(acc)                       # (Cin, Cout)
            row.append(jnp.concatenate(taps, axis=0))      # (4*Cin, Cout)
        phases.append(jnp.stack(row, axis=0))              # (2, 4*Cin, Cout)
    return jnp.stack(phases, axis=0).astype(w_hwio.dtype)  # (2, 2, 4*Cin, Cout)


def upsample_conv3x3_fused_nhwc(x, w_hwio, bias):
    n, h, w, cin = x.shape
    cout = w_hwio.shape[-1]
    it = x.dtype.itemsize
    wit = w_hwio.dtype.itemsize
    limit = _vmem_limit_bytes()

    # VMEM accounting: the (2,2,4Cin,Cout) weight block is double-buffered by the
    # pipeline (its block index is constant, so it is DMA'd only once, but two
    # buffers are still allocated) -> charge 2x weight + halo rows to the fixed
    # budget before sizing THI.
    fixed = 2 * (2 * 2 * 4 * cin * cout * wit) + 4 * w * cin * it + (1 << 20)
    # per input row: main block(x2) + slab + tap concats + f32 phase results +
    #                out block (2 row-phases, 2*Cout lanes, x2 buffers)
    per_row = w * (cin * it * 11 + cout * (8 + 8 * it))
    thi, h_pad = _pick_row_tile(h, per_row, limit // 2 - fixed)
    if h_pad != h:
        # Remainder tiles: pad H with zero rows (extra output rows are sliced off;
        # the conv's bottom boundary still sees zeros, so values are exact).
        x = jnp.pad(x, ((0, 0), (0, h_pad - h), (0, 0), (0, 0)))
    t = h_pad // thi

    wm = _fold_upsample_into_weights(w_hwio)               # (2, 2, 4*Cin, Cout)
    b2 = bias.reshape(1, cout).astype(jnp.float32)

    flops = 2 * n * (2 * h_pad) * (2 * w) * (4 * cin) * cout
    bytes_acc = (n * h_pad * w * cin * it
                 + n * h_pad * 2 * w * 2 * cout * it
                 + 2 * 2 * 4 * cin * cout * wit)

    out5 = pl.pallas_call(
        _upsample_conv3x3_kernel,
        out_shape=jax.ShapeDtypeStruct((n, h_pad, 2, w, 2 * cout), x.dtype),
        grid=(n, t),
        in_specs=[
            pl.BlockSpec((1, thi, w, cin), lambda i, j: (i, j, 0, 0)),
            pl.BlockSpec((1, 1, w, cin),
                         lambda i, j: (i, jnp.maximum(j * thi - 1, 0), 0, 0)),
            pl.BlockSpec((1, 1, w, cin),
                         lambda i, j: (i, jnp.minimum(j * thi + thi, h_pad - 1), 0, 0)),
            pl.BlockSpec((2, 2, 4 * cin, cout), lambda i, j: (0, 0, 0, 0)),
            pl.BlockSpec((1, cout), lambda i, j: (0, 0)),
        ],
        out_specs=pl.BlockSpec((1, thi, 2, w, 2 * cout),
                               lambda i, j: (i, j, 0, 0, 0)),
        compiler_params=pltpu.CompilerParams(
            dimension_semantics=("parallel", "parallel"),
            vmem_limit_bytes=limit),
        cost_estimate=pl.CostEstimate(flops=int(flops), transcendentals=0,
                                      bytes_accessed=int(bytes_acc)),
    )(x, x, x, wm, b2)

    out = out5.reshape(n, 2 * h_pad, 2 * w, cout)          # pure relabel reshape
    return out[:, :2 * h] if h_pad != h else out


# ----------------------------------------------------------------------------
# Module wrapper (PyTorch NCHW in / NCHW out).
# Note: the NCHW<->NHWC transposes are full HBM passes done by XLA outside the
# kernel; keep the surrounding model NHWC end-to-end to avoid them if possible.
# ----------------------------------------------------------------------------
def upsample_forward(x_nchw, w_oihw, bias, *, use_conv):
    x = jnp.transpose(x_nchw, (0, 2, 3, 1))           # NCHW -> NHWC
    if use_conv:
        w_hwio = jnp.transpose(w_oihw, (2, 3, 1, 0))  # OIHW -> HWIO
        y = upsample_conv3x3_fused_nhwc(x, w_hwio, bias)
    else:
        y = upsample_nearest2x_nhwc(x)
    return jnp.transpose(y, (0, 3, 1, 2))             # NHWC -> NCHW


# ----------------------------------------------------------------------------
# Pure-JAX reference (for correctness check)
# ----------------------------------------------------------------------------
def _ref_forward(x_nchw, w_oihw, bias, use_conv):
    x = jnp.repeat(jnp.repeat(x_nchw, 2, axis=2), 2, axis=3)
    if use_conv:
        x = jax.lax.conv_general_dilated(
            x, w_oihw, window_strides=(1, 1), padding="SAME",
            dimension_numbers=("NCHW", "OIHW", "NCHW"))
        x = x + bias[None, :, None, None]
    return x


if __name__ == "__main__":
    key = jax.random.PRNGKey(0)
    kx, kw_, kb = jax.random.split(key, 3)

    N, C, H, W = 2, 4, 16, 16
    x = jax.random.normal(kx, (N, C, H, W), jnp.float32)

    # Deterministic init mimicking nn.Conv2d defaults.
    fan_in = C * 3 * 3
    bound = 1.0 / float(np.sqrt(fan_in))
    w_oihw = jax.random.uniform(kw_, (C, C, 3, 3), jnp.float32, -bound, bound)
    bias = jax.random.uniform(kb, (C,), jnp.float32, -bound, bound)

    for use_conv in (False, True):
        out = upsample_forward(x, w_oihw, bias, use_conv=use_conv)
        out = jax.block_until_ready(out)
        ref = _ref_forward(x, w_oihw, bias, use_conv)
        assert out.shape == (N, C, 2 * H, 2 * W)
        np.testing.assert_allclose(np.asarray(out), np.asarray(ref),
                                   atol=1e-5, rtol=1e-5)

    print("KERNEL_OK")
</pallas_src>

<mosaic_0001>
module attributes {stable_mosaic.version = 11 : i64} {
  func.func @_upsample2x_kernel(%arg0: i32, %arg1: i32, %arg2: memref<1x16x16x4xf32, #tpu.memory_space<vmem>>, %arg3: memref<1x16x2x16x8xf32, #tpu.memory_space<vmem>>) attributes {dimension_semantics = [#tpu.dimension_semantics<parallel>, #tpu.dimension_semantics<parallel>], iteration_bounds = array<i64: 2, 1>, scalar_prefetch = 0 : i64, scratch_operands = 0 : i64, tpu.core_type = #tpu.core_type<tc>, window_params = [{transform_indices = @transform_0, window_bounds = array<i64: 1, 16, 16, 4>}, {transform_indices = @transform_1, window_bounds = array<i64: 1, 16, 2, 16, 8>}]} {
    %c0 = arith.constant 0 : index
    %c0_0 = arith.constant 0 : index
    %c0_1 = arith.constant 0 : index
    %c0_2 = arith.constant 0 : index
    %0 = vector.load %arg2[%c0, %c0_0, %c0_1, %c0_2] : memref<1x16x16x4xf32, #tpu.memory_space<vmem>>, vector<1x16x16x4xf32>
    %1 = vector.shape_cast %0 : vector<1x16x16x4xf32> to vector<16x16x4xf32>
    %2 = tpu.concatenate %1, %1 in 2 : vector<16x16x4xf32>, vector<16x16x4xf32> -> vector<16x16x8xf32>
    %3 = vector.shape_cast %2 : vector<16x16x8xf32> to vector<16x1x16x8xf32>
    %4 = vector.shape_cast %3 : vector<16x1x16x8xf32> to vector<16x1x16x8xf32>
    %5 = vector.broadcast %4 : vector<16x1x16x8xf32> to vector<16x2x16x8xf32>
    %c0_3 = arith.constant 0 : index
    %c0_4 = arith.constant 0 : index
    %c0_5 = arith.constant 0 : index
    %c0_6 = arith.constant 0 : index
    %c0_7 = arith.constant 0 : index
    %6 = vector.load %arg3[%c0_3, %c0_4, %c0_5, %c0_6, %c0_7] : memref<1x16x2x16x8xf32, #tpu.memory_space<vmem>>, vector<1x16x2x16x8xf32>
    %7 = vector.shape_cast %6 : vector<1x16x2x16x8xf32> to vector<16x2x16x8xf32>
    %8 = vector.shape_cast %5 : vector<16x2x16x8xf32> to vector<1x16x2x16x8xf32>
    tpu.vector_store %arg3[%c0_3, %c0_4, %c0_5, %c0_6, %c0_7], %8 {strides = array<i32>} : memref<1x16x2x16x8xf32, #tpu.memory_space<vmem>>, vector<1x16x2x16x8xf32>,
    return
  }
  func.func @transform_0(%arg0: i32, %arg1: i32) -> (i32, i32, i32, i32) {
    %c0_i32 = arith.constant 0 : i32
    %c0_i32_0 = arith.constant 0 : i32
    %c0_i32_1 = arith.constant 0 : i32
    return %arg0, %arg1, %c0_i32, %c0_i32_0 : i32, i32, i32, i32
  }
  func.func @transform_1(%arg0: i32, %arg1: i32) -> (i32, i32, i32, i32, i32) {
    %c0_i32 = arith.constant 0 : i32
    %c0_i32_0 = arith.constant 0 : i32
    %c0_i32_1 = arith.constant 0 : i32
    %c0_i32_2 = arith.constant 0 : i32
    return %arg0, %arg1, %c0_i32, %c0_i32_0, %c0_i32_1 : i32, i32, i32, i32, i32
  }
}

</mosaic_0001>

<llo_original>
// kernel: tpu_custom_call.1
$region0: #{tpu_custom_call.1}
  #allocation0 [shape = 'u32[]', space=smem, size = 0x4, offset = 0x4, fixed_abs, tag = 'smem constant byte address 0x4 - core index']
  #allocation1 [shape = 'u32[144,128]{1,0:T(1,128)}', space=vmem, size = 0x12000, scoped, tag = 'internal scratch']
  %s0 = inlined_call_operand.vmem [shape: f32[2,16,16,4], index: 0, kind: input, shape index: {}]
  %s1 = inlined_call_operand.vmem [shape: f32[2,16,2,16,8], index: 1, kind: output, shape index: {}]
  %s2 = sld [smem:[#allocation0]]
  $region37: #{tpu_custom_call.1} parent=0
    _
  %s4 = ssub.s32 1, %s2
  %s5 = scalar_select 0, %s4, %s2
  loop: start=0, step=1, limit=4
  $region2: #{tpu_custom_call.1} parent=0 // loop_pre_header
    _
  $region3: #{tpu_custom_call.1} parent=0 // loop_header
    %s7 = sphi 0, %s11
    %p8 = scmp.ge.s32.totalorder %s7, 4
    %s14 = sphi 0, %s26
    %s15 = sphi 0, %s22
    %s16 = sphi 0, %s14
    %s17 = sphi 0, %s15
    %s18 = sphi 0, %s16
    %s19 = sphi 0, %s17
    %s31 = sphi 0, %s33
    %s34 = sphi 0, %s31
    %s35 = sphi 0, %s34
    %s51 = sphi 0, %s35
    %s59 = sphi 0, %s61
    %s62 = sphi 0, %s59
    %s63 = sphi 0, %s62
    %s79 = sphi 0, %s63
  $region4: #{tpu_custom_call.1} parent=0 // loop_header_branch
    %10 = sbr.rel (%p8) target = $region8
  $region5: #{tpu_custom_call.1} parent=0 // loop_body
    %s12 = ssub.s32 %s7, 1
    %s13 = ssub.s32 %s7, 2
    %s20 = sadd.s32 1, %s15
    %p21 = scmp.ge.s32.totalorder %s20, 1
    %s22 = scalar_select %p21, 0, %s20
    %s23 = sadd.s32 1, %s14
    %s24 = scalar_select %p21, %s23, %s14
    %p25 = scmp.ge.s32.totalorder %s24, 2
    %s26 = scalar_select %p25, 0, %s24
    %s27 = ssub.s32 %s14, %s26
    %s28 = ssub.s32 %s15, %s22
    %s29 = sor.u32 %s27, %s28
    %p30 = scmp.eq.s32.totalorder %s29, 0
    %s32 = sadd.s32 %s31, 1
    %s33 = scalar_select %p30, %s31, %s32
    %p36 = pneg %p30
    %p37 = scmp.eq.s32.totalorder %s7, 1
    %p38 = por %p36, %p37
    %p39 = scmp.ne.s32.totalorder %s31, %s34
    %p40 = scmp.eq.s32.totalorder %s7, 0
    %p41 = por %p39, %p40
    %p42 = scmp.ne.s32.totalorder %s31, %s34
    %p43 = scmp.eq.s32.totalorder %s12, 1
    %p44 = por %p42, %p43
    %p45 = scmp.ne.s32.totalorder %s34, %s35
    %p46 = scmp.eq.s32.totalorder %s12, 0
    %p47 = por %p45, %p46
    %p48 = scmp.ne.s32.totalorder %s34, %s35
    %p49 = scmp.eq.s32.totalorder %s13, 1
    %p50 = por %p48, %p49
    %p52 = scmp.ne.s32.totalorder %s35, %s51
    %p53 = scmp.eq.s32.totalorder %s13, 0
    %p54 = por %p52, %p53
    %s55 = ssub.s32 %s14, %s26
    %s56 = ssub.s32 %s15, %s22
    %s57 = sor.u32 %s55, %s56
    %p58 = scmp.eq.s32.totalorder %s57, 0
    %s60 = sadd.s32 %s59, 1
    %s61 = scalar_select %p58, %s59, %s60
    %p64 = pneg %p58
    %p65 = scmp.eq.s32.totalorder %s7, 1
    %p66 = por %p64, %p65
    %p67 = scmp.ne.s32.totalorder %s59, %s62
    %p68 = scmp.eq.s32.totalorder %s7, 0
    %p69 = por %p67, %p68
    %p70 = scmp.ne.s32.totalorder %s59, %s62
    %p71 = scmp.eq.s32.totalorder %s12, 1
    %p72 = por %p70, %p71
    %p73 = scmp.ne.s32.totalorder %s62, %s63
    %p74 = scmp.eq.s32.totalorder %s12, 0
    %p75 = por %p73, %p74
    %p76 = scmp.ne.s32.totalorder %s62, %s63
    %p77 = scmp.eq.s32.totalorder %s13, 1
    %p78 = por %p76, %p77
    %p80 = scmp.ne.s32.totalorder %s63, %s79
    %p81 = scmp.eq.s32.totalorder %s13, 0
    %p82 = por %p80, %p81
    %p83 = scmp.le.s32.totalorder 1, %s7
    %p84 = scmp.lt.s32.totalorder %s7, 3
    %p85 = pnand %p83, %p84
    %p86 = pneg %p85
    // Predicated region
    $region9: #{tpu_custom_call.1} parent=5 // pred_check
      _
    $region10: #{tpu_custom_call.1} parent=5 // pred_check_branch
      %88 = sbr.rel (%p85) target = $region12
    $region11: #{tpu_custom_call.1} parent=5 // pred_region
      %s89 = ssub.s32 %s7, 1
    $region12: #{tpu_custom_call.1} parent=5 // pred_fallthru
      _
    %p90 = scmp.lt.s32.totalorder %s7, 2
    // Predicated region
    $region13: #{tpu_custom_call.1} parent=5 // pred_check
      %p91 = pneg %p90
    $region14: #{tpu_custom_call.1} parent=5 // pred_check_branch
      %93 = sbr.rel (%p91) target = $region16
    $region15: #{tpu_custom_call.1} parent=5 // pred_region
      // Predicated region
      $region17: #{tpu_custom_call.1} parent=15 // pred_check
        %p94 = pneg %p41
      $region18: #{tpu_custom_call.1} parent=15 // pred_check_branch
        %96 = sbr.rel (%p94) target = $region20
      $region19: #{tpu_custom_call.1} parent=15 // pred_region
        %s97 = smul.u32 16, %s15
        %p98 = scmp.lt.s32.totalorder %s14, 1
        %s99 = scalar_select %p98, %s14, 1
        %p100 = scmp.lt.s32.totalorder %s97, 15
        %s101 = scalar_select %p100, %s97, 15
        %s102 = smul.addr %s101, 2
        %s103 = smul.addr %s99, 32
        %s104 = sadd.s32 %s102, %s103
        %s105 = smul.addr %s104, 8
        %s106 = scalar_lea.vmem %s0, %s105
        %s107 = smul.u32 16, %s15
      $region20: #{tpu_custom_call.1} parent=15 // pred_fallthru
        _
    $region16: #{tpu_custom_call.1} parent=5 // pred_fallthru
      _
    %p108 = scmp.le.s32.totalorder 1, %s7
    %p109 = scmp.lt.s32.totalorder %s7, 3
    %p110 = pnand %p108, %p109
    %p111 = pneg %p110
    // Predicated region
    $region21: #{tpu_custom_call.1} parent=5 // pred_check
      _
    $region22: #{tpu_custom_call.1} parent=5 // pred_check_branch
      %113 = sbr.rel (%p110) target = $region24
    $region23: #{tpu_custom_call.1} parent=5 // pred_region
      %s114 = ssub.s32 %s7, 1
      %s115 = smul.u32 16, %s17
      %p116 = scmp.lt.s32.totalorder %s16, 1
      %s117 = scalar_select %p116, %s16, 1
      %p118 = scmp.lt.s32.totalorder %s115, 15
      %s119 = scalar_select %p118, %s115, 15
      %s120 = smul.addr %s119, 2
      %s121 = smul.addr %s117, 32
      %s122 = sadd.s32 %s120, %s121
      %s123 = smul.addr %s122, 8
      %s124 = scalar_lea.vmem %s0, %s123
      %p125 = pneg %p47
      %p126 = pneg %p44
      %p127 = pneg %p75
      %p128 = pneg %p72
      %s129 = smul.u32 16, %s17
      %p130 = scmp.lt.s32.totalorder %s16, 1
      %s131 = scalar_select %p130, %s16, 1
      %p132 = scmp.lt.s32.totalorder %s129, 15
      %s133 = scalar_select %p132, %s129, 15
      %s134 = smul.addr %s133, 4
      %s135 = smul.addr %s131, 64
      %s136 = sadd.s32 %s134, %s135
      %s137 = smul.addr %s136, 8
      %s138 = scalar_lea.vmem %s1, %s137
      %s139 = smul.u32 16, %s17
      %p140 = scmp.lt.s32.totalorder %s16, 1
      %s141 = scalar_select %p140, %s16, 1
      %p142 = scmp.lt.s32.totalorder %s139, 15
      %s143 = scalar_select %p142, %s139, 15
      %s144 = smul.addr %s143, 2
      %s145 = smul.addr %s141, 32
      %s146 = sadd.s32 %s144, %s145
      %s147 = smul.addr %s146, 8
      %s148 = scalar_lea.vmem %s0, %s147
      %s149 = smul.u32 16, %s17
      %s150 = smul.u32 16, %s17
      %p151 = scmp.lt.s32.totalorder %s16, 1
      %s152 = scalar_select %p151, %s16, 1
      %p153 = scmp.lt.s32.totalorder %s150, 15
      %s154 = scalar_select %p153, %s150, 15
      %s155 = smul.addr %s154, 4
      %s156 = smul.addr %s152, 64
      %s157 = sadd.s32 %s155, %s156
      %s158 = smul.addr %s157, 8
      %s159 = scalar_lea.vmem %s1, %s158
      %s160 = smul.u32 16, %s17
      %v161 = vld [vmem:[%s148] sm:$0xff]
      %v162 = vld [vmem:[%s148 + $0x8] sm:$0xff]
      %v163 = vld [vmem:[%s148 + $0x10] sm:$0xff]
      %v164 = vld [vmem:[%s148 + $0x18] sm:$0xff]
      %v165 = vld [vmem:[%s148 + $0x20] sm:$0xff]
      %v166 = vld [vmem:[%s148 + $0x28] sm:$0xff]
      %v167 = vld [vmem:[%s148 + $0x30] sm:$0xff]
      %v168 = vld [vmem:[%s148 + $0x38] sm:$0xff]
      %v169 = vld [vmem:[%s148 + $0x40] sm:$0xff]
      %v170 = vld [vmem:[%s148 + $0x48] sm:$0xff]
      %v171 = vld [vmem:[%s148 + $0x50] sm:$0xff]
      %v172 = vld [vmem:[%s148 + $0x58] sm:$0xff]
      %v173 = vld [vmem:[%s148 + $0x60] sm:$0xff]
      %v174 = vld [vmem:[%s148 + $0x68] sm:$0xff]
      %v175 = vld [vmem:[%s148 + $0x70] sm:$0xff]
      %v176 = vld [vmem:[%s148 + $0x78] sm:$0xff]
      %v177 = vld [vmem:[%s148 + $0x80] sm:$0xff]
      %v178 = vld [vmem:[%s148 + $0x88] sm:$0xff]
      %v179 = vld [vmem:[%s148 + $0x90] sm:$0xff]
      %v180 = vld [vmem:[%s148 + $0x98] sm:$0xff]
      %v181 = vld [vmem:[%s148 + $0xa0] sm:$0xff]
      %v182 = vld [vmem:[%s148 + $0xa8] sm:$0xff]
      %v183 = vld [vmem:[%s148 + $0xb0] sm:$0xff]
      %v184 = vld [vmem:[%s148 + $0xb8] sm:$0xff]
      %v185 = vld [vmem:[%s148 + $0xc0] sm:$0xff]
      %v186 = vld [vmem:[%s148 + $0xc8] sm:$0xff]
      %v187 = vld [vmem:[%s148 + $0xd0] sm:$0xff]
      %v188 = vld [vmem:[%s148 + $0xd8] sm:$0xff]
      %v189 = vld [vmem:[%s148 + $0xe0] sm:$0xff]
      %v190 = vld [vmem:[%s148 + $0xe8] sm:$0xff]
      %v191 = vld [vmem:[%s148 + $0xf0] sm:$0xff]
      %v192 = vld [vmem:[%s148 + $0xf8] sm:$0xff]
      %225 = vrot.lane.b32.xlu0 %v161, 4
      %v226 = vpop.permute.xlu0 %225
      %227 = vrot.lane.b32.xlu0 %v162, 4
      %v228 = vpop.permute.xlu0 %227
      %229 = vrot.lane.b32.xlu0 %v163, 4
      %v230 = vpop.permute.xlu0 %229
      %231 = vrot.lane.b32.xlu0 %v164, 4
      %v232 = vpop.permute.xlu0 %231
      %233 = vrot.lane.b32.xlu0 %v165, 4
      %v234 = vpop.permute.xlu0 %233
      %235 = vrot.lane.b32.xlu0 %v166, 4
      %v236 = vpop.permute.xlu0 %235
      %237 = vrot.lane.b32.xlu0 %v167, 4
      %v238 = vpop.permute.xlu0 %237
      %239 = vrot.lane.b32.xlu0 %v168, 4
      %v240 = vpop.permute.xlu0 %239
      %241 = vrot.lane.b32.xlu0 %v169, 4
      %v242 = vpop.permute.xlu0 %241
      %243 = vrot.lane.b32.xlu0 %v170, 4
      %v244 = vpop.permute.xlu0 %243
      %245 = vrot.lane.b32.xlu0 %v171, 4
      %v246 = vpop.permute.xlu0 %245
      %247 = vrot.lane.b32.xlu0 %v172, 4
      %v248 = vpop.permute.xlu0 %247
      %249 = vrot.lane.b32.xlu0 %v173, 4
      %v250 = vpop.permute.xlu0 %249
      %251 = vrot.lane.b32.xlu0 %v174, 4
      %v252 = vpop.permute.xlu0 %251
      %253 = vrot.lane.b32.xlu0 %v175, 4
      %v254 = vpop.permute.xlu0 %253
      %255 = vrot.lane.b32.xlu0 %v176, 4
      %v256 = vpop.permute.xlu0 %255
      %257 = vrot.lane.b32.xlu0 %v177, 4
      %v258 = vpop.permute.xlu0 %257
      %259 = vrot.lane.b32.xlu0 %v178, 4
      %v260 = vpop.permute.xlu0 %259
      %261 = vrot.lane.b32.xlu0 %v179, 4
      %v262 = vpop.permute.xlu0 %261
      %263 = vrot.lane.b32.xlu0 %v180, 4
      %v264 = vpop.permute.xlu0 %263
      %265 = vrot.lane.b32.xlu0 %v181, 4
      %v266 = vpop.permute.xlu0 %265
      %267 = vrot.lane.b32.xlu0 %v182, 4
      %v268 = vpop.permute.xlu0 %267
      %269 = vrot.lane.b32.xlu0 %v183, 4
      %v270 = vpop.permute.xlu0 %269
      %271 = vrot.lane.b32.xlu0 %v184, 4
      %v272 = vpop.permute.xlu0 %271
      %273 = vrot.lane.b32.xlu0 %v185, 4
      %v274 = vpop.permute.xlu0 %273
      %275 = vrot.lane.b32.xlu0 %v186, 4
      %v276 = vpop.permute.xlu0 %275
      %277 = vrot.lane.b32.xlu0 %v187, 4
      %v278 = vpop.permute.xlu0 %277
      %279 = vrot.lane.b32.xlu0 %v188, 4
      %v280 = vpop.permute.xlu0 %279
      %281 = vrot.lane.b32.xlu0 %v189, 4
      %v282 = vpop.permute.xlu0 %281
      %283 = vrot.lane.b32.xlu0 %v190, 4
      %v284 = vpop.permute.xlu0 %283
      %285 = vrot.lane.b32.xlu0 %v191, 4
      %v286 = vpop.permute.xlu0 %285
      %287 = vrot.lane.b32.xlu0 %v192, 4
      %v288 = vpop.permute.xlu0 %287
      %vm321 = vcmask 31744
      %v322 = vsel %vm321, %v161, %v226
      %v323 = vsel %vm321, %v162, %v228
      %v324 = vsel %vm321, %v163, %v230
      %v325 = vsel %vm321, %v164, %v232
      %v326 = vsel %vm321, %v165, %v234
      %v327 = vsel %vm321, %v166, %v236
      %v328 = vsel %vm321, %v167, %v238
      %v329 = vsel %vm321, %v168, %v240
      %v330 = vsel %vm321, %v169, %v242
      %v331 = vsel %vm321, %v170, %v244
      %v332 = vsel %vm321, %v171, %v246
      %v333 = vsel %vm321, %v172, %v248
      %v334 = vsel %vm321, %v173, %v250
      %v335 = vsel %vm321, %v174, %v252
      %v336 = vsel %vm321, %v175, %v254
      %v337 = vsel %vm321, %v176, %v256
      %v338 = vsel %vm321, %v177, %v258
      %v339 = vsel %vm321, %v178, %v260
      %v340 = vsel %vm321, %v179, %v262
      %v341 = vsel %vm321, %v180, %v264
      %v342 = vsel %vm321, %v181, %v266
      %v343 = vsel %vm321, %v182, %v268
      %v344 = vsel %vm321, %v183, %v270
      %v345 = vsel %vm321, %v184, %v272
      %v346 = vsel %vm321, %v185, %v274
      %v347 = vsel %vm321, %v186, %v276
      %v348 = vsel %vm321, %v187, %v278
      %v349 = vsel %vm321, %v188, %v280
      %v350 = vsel %vm321, %v189, %v282
      %v351 = vsel %vm321, %v190, %v284
      %v352 = vsel %vm321, %v191, %v286
      %v353 = vsel %vm321, %v192, %v288
      %vm354 = vcmask 64512
      %355 = vst.msk [vmem:[%s159] sm:$0xff] %vm354, %v322
      %356 = vst.msk [vmem:[%s159 + $0x8] sm:$0xff] %vm354, %v323
      %357 = vst.msk [vmem:[%s159 + $0x10] sm:$0xff] %vm354, %v322
      %358 = vst.msk [vmem:[%s159 + $0x18] sm:$0xff] %vm354, %v323
      %359 = vst.msk [vmem:[%s159 + $0x20] sm:$0xff] %vm354, %v324
      %360 = vst.msk [vmem:[%s159 + $0x28] sm:$0xff] %vm354, %v325
      %361 = vst.msk [vmem:[%s159 + $0x30] sm:$0xff] %vm354, %v324
      %362 = vst.msk [vmem:[%s159 + $0x38] sm:$0xff] %vm354, %v325
      %363 = vst.msk [vmem:[%s159 + $0x40] sm:$0xff] %vm354, %v326
      %364 = vst.msk [vmem:[%s159 + $0x48] sm:$0xff] %vm354, %v327
      %365 = vst.msk [vmem:[%s159 + $0x50] sm:$0xff] %vm354, %v326
      %366 = vst.msk [vmem:[%s159 + $0x58] sm:$0xff] %vm354, %v327
      %367 = vst.msk [vmem:[%s159 + $0x60] sm:$0xff] %vm354, %v328
      %368 = vst.msk [vmem:[%s159 + $0x68] sm:$0xff] %vm354, %v329
      %369 = vst.msk [vmem:[%s159 + $0x70] sm:$0xff] %vm354, %v328
      %370 = vst.msk [vmem:[%s159 + $0x78] sm:$0xff] %vm354, %v329
      %371 = vst.msk [vmem:[%s159 + $0x80] sm:$0xff] %vm354, %v330
      %372 = vst.msk [vmem:[%s159 + $0x88] sm:$0xff] %vm354, %v331
      %373 = vst.msk [vmem:[%s159 + $0x90] sm:$0xff] %vm354, %v330
      %374 = vst.msk [vmem:[%s159 + $0x98] sm:$0xff] %vm354, %v331
      %375 = vst.msk [vmem:[%s159 + $0xa0] sm:$0xff] %vm354, %v332
      %376 = vst.msk [vmem:[%s159 + $0xa8] sm:$0xff] %vm354, %v333
      %377 = vst.msk [vmem:[%s159 + $0xb0] sm:$0xff] %vm354, %v332
      %378 = vst.msk [vmem:[%s159 + $0xb8] sm:$0xff] %vm354, %v333
      %379 = vst.msk [vmem:[%s159 + $0xc0] sm:$0xff] %vm354, %v334
      %380 = vst.msk [vmem:[%s159 + $0xc8] sm:$0xff] %vm354, %v335
      %381 = vst.msk [vmem:[%s159 + $0xd0] sm:$0xff] %vm354, %v334
      %382 = vst.msk [vmem:[%s159 + $0xd8] sm:$0xff] %vm354, %v335
      %383 = vst.msk [vmem:[%s159 + $0xe0] sm:$0xff] %vm354, %v336
      %384 = vst.msk [vmem:[%s159 + $0xe8] sm:$0xff] %vm354, %v337
      %385 = vst.msk [vmem:[%s159 + $0xf0] sm:$0xff] %vm354, %v336
      %386 = vst.msk [vmem:[%s159 + $0xf8] sm:$0xff] %vm354, %v337
      %387 = vst.msk [vmem:[%s159 + $0x100] sm:$0xff] %vm354, %v338
      %388 = vst.msk [vmem:[%s159 + $0x108] sm:$0xff] %vm354, %v339
      %389 = vst.msk [vmem:[%s159 + $0x110] sm:$0xff] %vm354, %v338
      %390 = vst.msk [vmem:[%s159 + $0x118] sm:$0xff] %vm354, %v339
      %391 = vst.msk [vmem:[%s159 + $0x120] sm:$0xff] %vm354, %v340
      %392 = vst.msk [vmem:[%s159 + $0x128] sm:$0xff] %vm354, %v341
      %393 = vst.msk [vmem:[%s159 + $0x130] sm:$0xff] %vm354, %v340
      %394 = vst.msk [vmem:[%s159 + $0x138] sm:$0xff] %vm354, %v341
      %395 = vst.msk [vmem:[%s159 + $0x140] sm:$0xff] %vm354, %v342
      %396 = vst.msk [vmem:[%s159 + $0x148] sm:$0xff] %vm354, %v343
      %397 = vst.msk [vmem:[%s159 + $0x150] sm:$0xff] %vm354, %v342
      %398 = vst.msk [vmem:[%s159 + $0x158] sm:$0xff] %vm354, %v343
      %399 = vst.msk [vmem:[%s159 + $0x160] sm:$0xff] %vm354, %v344
      %400 = vst.msk [vmem:[%s159 + $0x168] sm:$0xff] %vm354, %v345
      %401 = vst.msk [vmem:[%s159 + $0x170] sm:$0xff] %vm354, %v344
      %402 = vst.msk [vmem:[%s159 + $0x178] sm:$0xff] %vm354, %v345
      %403 = vst.msk [vmem:[%s159 + $0x180] sm:$0xff] %vm354, %v346
      %404 = vst.msk [vmem:[%s159 + $0x188] sm:$0xff] %vm354, %v347
      %405 = vst.msk [vmem:[%s159 + $0x190] sm:$0xff] %vm354, %v346
      %406 = vst.msk [vmem:[%s159 + $0x198] sm:$0xff] %vm354, %v347
      %407 = vst.msk [vmem:[%s159 + $0x1a0] sm:$0xff] %vm354, %v348
      %408 = vst.msk [vmem:[%s159 + $0x1a8] sm:$0xff] %vm354, %v349
      %409 = vst.msk [vmem:[%s159 + $0x1b0] sm:$0xff] %vm354, %v348
      %410 = vst.msk [vmem:[%s159 + $0x1b8] sm:$0xff] %vm354, %v349
      %411 = vst.msk [vmem:[%s159 + $0x1c0] sm:$0xff] %vm354, %v350
      %412 = vst.msk [vmem:[%s159 + $0x1c8] sm:$0xff] %vm354, %v351
      %413 = vst.msk [vmem:[%s159 + $0x1d0] sm:$0xff] %vm354, %v350
      %414 = vst.msk [vmem:[%s159 + $0x1d8] sm:$0xff] %vm354, %v351
      %415 = vst.msk [vmem:[%s159 + $0x1e0] sm:$0xff] %vm354, %v352
      %416 = vst.msk [vmem:[%s159 + $0x1e8] sm:$0xff] %vm354, %v353
      %417 = vst.msk [vmem:[%s159 + $0x1f0] sm:$0xff] %vm354, %v352
      %418 = vst.msk [vmem:[%s159 + $0x1f8] sm:$0xff] %vm354, %v353
      %s419 = smul.u32 16, %s17
      %p420 = scmp.lt.s32.totalorder %s16, 1
      %s421 = scalar_select %p420, %s16, 1
      %p422 = scmp.lt.s32.totalorder %s419, 15
      %s423 = scalar_select %p422, %s419, 15
      %s424 = smul.addr %s423, 4
      %s425 = smul.addr %s421, 64
      %s426 = sadd.s32 %s424, %s425
      %s427 = smul.addr %s426, 8
      %s428 = scalar_lea.vmem %s1, %s427
      // Predicated region
      $region25: #{tpu_custom_call.1} parent=23 // pred_check
        %p429 = pneg %p72
      $region26: #{tpu_custom_call.1} parent=23 // pred_check_branch
        %431 = sbr.rel (%p429) target = $region28
      $region27: #{tpu_custom_call.1} parent=23 // pred_region
        %s432 = smul.u32 16, %s17
      $region28: #{tpu_custom_call.1} parent=23 // pred_fallthru
        _
    $region24: #{tpu_custom_call.1} parent=5 // pred_fallthru
      _
    %p433 = scmp.le.s32.totalorder 2, %s7
    // Predicated region
    $region29: #{tpu_custom_call.1} parent=5 // pred_check
      %p434 = pneg %p433
    $region30: #{tpu_custom_call.1} parent=5 // pred_check_branch
      %436 = sbr.rel (%p434) target = $region32
    $region31: #{tpu_custom_call.1} parent=5 // pred_region
      %s437 = ssub.s32 %s7, 2
      // Predicated region
      $region33: #{tpu_custom_call.1} parent=31 // pred_check
        %p438 = pneg %p78
      $region34: #{tpu_custom_call.1} parent=31 // pred_check_branch
        %440 = sbr.rel (%p438) target = $region36
      $region35: #{tpu_custom_call.1} parent=31 // pred_region
        %s441 = smul.u32 16, %s19
        %p442 = scmp.lt.s32.totalorder %s18, 1
        %s443 = scalar_select %p442, %s18, 1
        %p444 = scmp.lt.s32.totalorder %s441, 15
        %s445 = scalar_select %p444, %s441, 15
        %s446 = smul.addr %s445, 4
        %s447 = smul.addr %s443, 64
        %s448 = sadd.s32 %s446, %s447
        %s449 = smul.addr %s448, 8
        %s450 = scalar_lea.vmem %s1, %s449
      $region36: #{tpu_custom_call.1} parent=31 // pred_fallthru
        _
    $region32: #{tpu_custom_call.1} parent=5 // pred_fallthru
      _
  $region6: #{tpu_custom_call.1} parent=0 // loop_footer
    %s11 = sadd.s32 1, %s7
  $region7: #{tpu_custom_call.1} parent=0 // loop_footer_branch
    %6 = sbr.rel target = $region3
  $region8: #{tpu_custom_call.1} parent=0 // loop_exit
    _

</llo_original>
